<compile_context>
chip_gen: v5e
topology: v5e:2x2
jax: 0.10.0
libtpu: 0.0.40
codegen_flags: <defaults>
</compile_context>

<pallas_src>
import functools

import jax
import jax.numpy as jnp
from jax.experimental import pallas as pl
from jax.experimental.pallas import tpu as pltpu

BN_EPS = 1e-12  # torch.nn.BatchNorm1d(feats_dim, eps=1e-12)


def _round_up(a, m):
    return (a + m - 1) // m * m


# --------------------------------------------------------------------------------------
# Fused kernel. grid = (pass, row_tile).  Scratch persists across grid steps.
# --------------------------------------------------------------------------------------
def _channel_predictor_kernel(x_ref, gamma_ref, beta_ref, w1_ref, b1_ref, w2_ref,
                              b2_ref, o_ref, sum_ref, sumsq_ref, scale_ref, b1e_ref,
                              *, inv_n):
    p = pl.program_id(0)   # 0 = stats pass, 1 = compute pass
    t = pl.program_id(1)   # row-tile index

    # ---------------- pass 0: per-channel batch statistics ----------------
    @pl.when(p == 0)
    def _stats():
        @pl.when(t == 0)
        def _init():
            sum_ref[...] = jnp.zeros_like(sum_ref)
            sumsq_ref[...] = jnp.zeros_like(sumsq_ref)

        xt = x_ref[...].astype(jnp.float32)                        # (T, F)
        sum_ref[...] += jnp.sum(xt, axis=0, keepdims=True)         # (1, F)
        sumsq_ref[...] += jnp.sum(xt * xt, axis=0, keepdims=True)  # (1, F)
        # The output block is written back after every grid step; give it defined
        # bytes here (pass 1 fully overwrites it with the real result).
        o_ref[...] = jnp.zeros_like(o_ref)

    # -------- pass 1, tile 0: fold BatchNorm into the first linear's epilogue --------
    @pl.when(jnp.logical_and(p == 1, t == 0))
    def _fold():
        mean = sum_ref[...] * inv_n                                # (1, F)
        # eps=1e-12 is << f32 cancellation of E[x^2]-mean^2: clamp variance at 0.
        var = jnp.maximum(sumsq_ref[...] * inv_n - mean * mean, 0.0)
        scale = gamma_ref[...] * jax.lax.rsqrt(var + BN_EPS)       # (1, F)
        shift = beta_ref[...] - mean * scale                       # (1, F)
        scale_ref[...] = scale
        # b1_eff = b1 + shift @ w1: the additive part of BN folded into the bias.
        # The multiplicative part stays as a single per-element scale on x below,
        # which avoids a (1,F)->(F,1) relayout of `scale` inside the kernel.
        b1e_ref[...] = b1_ref[...] + jnp.dot(
            shift.astype(jnp.bfloat16), w1_ref[...],
            preferred_element_type=jnp.float32)

    # ---------------- pass 1: BN scale -> Linear -> ReLU -> Linear ----------------
    @pl.when(p == 1)
    def _compute():
        xt = x_ref[...].astype(jnp.float32)                        # (T, F)
        xs = (xt * scale_ref[...]).astype(jnp.bfloat16)            # BN scale, bf16 for MXU
        h = jnp.dot(xs, w1_ref[...],
                    preferred_element_type=jnp.float32) + b1e_ref[...]
        h = jnp.maximum(h, 0.0)                                    # (T, H) f32
        # out_linear (H -> 1) as (1,H) . (T,H)^T -> lane-dense (1, T) MXU result so the
        # store is a full-lane slab, not a masked last-dim-1 column.
        out = jax.lax.dot_general(
            w2_ref[...], h,
            dimension_numbers=(((1,), (1,)), ((), ())),
            preferred_element_type=jnp.float32)                    # (1, T)
        o_ref[...] = (out + b2_ref[0]).astype(o_ref.dtype)


# --------------------------------------------------------------------------------------
# Wrapper: tiling, padding, BlockSpecs.
# --------------------------------------------------------------------------------------
def channel_predictor(x, params, *, tile_n=None):
    """x: (N, F) float32 (bf16 also accepted; halves the HBM stream).
    Returns (N,) float32 — matches the torch forward + squeeze(-1)."""
    N, F = x.shape
    H = params["w1"].shape[1]

    if tile_n is None:
        # 512 rows/tile ~= 1.3 MiB double-buffered VMEM: fits comfortably on v5e/v6e
        # (128 MiB) and v7x (64 MiB) while keeping the x stream pipelined.
        tile_n = 512 if N >= 512 else _round_up(N, 8)
    num_tiles = pl.cdiv(N, tile_n)
    n_pad = num_tiles * tile_n
    if n_pad != N:
        # Zero rows add nothing to sum/sumsq and the divisor is the true N, so padding
        # does not perturb the batch statistics.
        x = jnp.pad(x, ((0, n_pad - N), (0, 0)))

    kernel = functools.partial(_channel_predictor_kernel, inv_n=1.0 / N)

    out = pl.pallas_call(
        kernel,
        out_shape=jax.ShapeDtypeStruct((1, n_pad), jnp.float32),
        grid=(2, num_tiles),                                        # (pass, row tile)
        in_specs=[
            pl.BlockSpec((tile_n, F), lambda p, t: (t, 0)),         # x: streamed row tiles
            pl.BlockSpec((1, F), lambda p, t: (0, 0)),              # gamma
            pl.BlockSpec((1, F), lambda p, t: (0, 0)),              # beta
            pl.BlockSpec((F, H), lambda p, t: (0, 0)),              # w1 (in, out), bf16
            pl.BlockSpec((1, H), lambda p, t: (0, 0)),              # b1
            pl.BlockSpec((1, H), lambda p, t: (0, 0)),              # w2
            pl.BlockSpec(memory_space=pltpu.MemorySpace.SMEM),      # b2 scalar
        ],
        out_specs=pl.BlockSpec((1, tile_n), lambda p, t: (0, t)),   # lane-dense slab
        scratch_shapes=[
            pltpu.VMEM((1, F), jnp.float32),   # per-channel sum
            pltpu.VMEM((1, F), jnp.float32),   # per-channel sum of squares
            pltpu.VMEM((1, F), jnp.float32),   # folded BN scale
            pltpu.VMEM((1, H), jnp.float32),   # folded bias b1_eff
        ],
        compiler_params=pltpu.CompilerParams(
            dimension_semantics=("arbitrary", "arbitrary")),
    )(
        x,
        params["gamma"].reshape(1, F).astype(jnp.float32),
        params["beta"].reshape(1, F).astype(jnp.float32),
        params["w1"].astype(jnp.bfloat16),     # bf16 MXU operand, halves w1 DMA
        params["b1"].reshape(1, H).astype(jnp.float32),
        params["w2"].reshape(1, H).astype(jnp.float32),
        params["b2"].reshape(1).astype(jnp.float32),
    )
    return out[0, :N]                                               # squeeze(-1)


# --------------------------------------------------------------------------------------
# Pure-JAX reference (same math, f32) for an in-script sanity check.
# --------------------------------------------------------------------------------------
def _reference(x, params):
    x = x.astype(jnp.float32)
    mean = jnp.mean(x, axis=0, keepdims=True)
    var = jnp.mean(jnp.square(x - mean), axis=0, keepdims=True)
    xn = (x - mean) / jnp.sqrt(var + BN_EPS) * params["gamma"] + params["beta"]
    h = jnp.maximum(xn @ params["w1"] + params["b1"], 0.0)
    return jnp.sum(h * params["w2"], axis=-1) + params["b2"]


# --------------------------------------------------------------------------------------
# Deterministic synthetic parameters (shapes follow the torch module; w1 stored
# pre-transposed to (in, out) so the kernel matmul needs no transpose).
# --------------------------------------------------------------------------------------
def init_params(key, feats_dim, hidden_dim):
    ks = jax.random.split(key, 6)
    return dict(
        gamma=1.0 + 0.1 * jax.random.normal(ks[0], (feats_dim,), jnp.float32),
        beta=0.1 * jax.random.normal(ks[1], (feats_dim,), jnp.float32),
        w1=0.1 * jax.random.normal(ks[2], (feats_dim, hidden_dim), jnp.float32),
        b1=0.1 * jax.random.normal(ks[3], (hidden_dim,), jnp.float32),
        w2=0.1 * jax.random.normal(ks[4], (hidden_dim,), jnp.float32),
        b2=0.1 * jax.random.normal(ks[5], (), jnp.float32),
    )


if __name__ == "__main__":
    FEATS, HIDDEN = 128, 256                       # module defaults

    key = jax.random.PRNGKey(0)
    k_x, k_p, k_x2 = jax.random.split(key, 3)
    params = init_params(k_p, FEATS, HIDDEN)

    # Case 1: small batch, no padding.
    x = jax.random.normal(k_x, (8, FEATS), jnp.float32)
    out = jax.block_until_ready(channel_predictor(x, params))
    assert out.shape == (8,), out.shape
    assert bool(jnp.all(jnp.isfinite(out)))
    ref = _reference(x, params)
    assert bool(jnp.allclose(out, ref, rtol=5e-2, atol=5e-2)), (out, ref)

    # Case 2: batch that needs row padding (exercises the padded-stats path).
    x2 = jax.random.normal(k_x2, (20, FEATS), jnp.float32)
    out2 = jax.block_until_ready(channel_predictor(x2, params))
    assert out2.shape == (20,), out2.shape
    ref2 = _reference(x2, params)
    assert bool(jnp.allclose(out2, ref2, rtol=5e-2, atol=5e-2)), (out2, ref2)

    print("KERNEL_OK")
</pallas_src>

<mosaic_0001>
module attributes {stable_mosaic.version = 11 : i64} {
  func.func @_channel_predictor_kernel(%arg0: i32, %arg1: i32, %arg2: memref<8x128xf32, #tpu.memory_space<vmem>>, %arg3: memref<1x128xf32, #tpu.memory_space<vmem>>, %arg4: memref<1x128xf32, #tpu.memory_space<vmem>>, %arg5: memref<128x256xbf16, #tpu.memory_space<vmem>>, %arg6: memref<1x256xf32, #tpu.memory_space<vmem>>, %arg7: memref<1x256xf32, #tpu.memory_space<vmem>>, %arg8: memref<1xf32, #tpu.memory_space<smem>>, %arg9: memref<1x8xf32, #tpu.memory_space<vmem>>, %arg10: memref<1x128xf32, #tpu.memory_space<vmem>>, %arg11: memref<1x128xf32, #tpu.memory_space<vmem>>, %arg12: memref<1x128xf32, #tpu.memory_space<vmem>>, %arg13: memref<1x256xf32, #tpu.memory_space<vmem>>) attributes {dimension_semantics = [#tpu.dimension_semantics<arbitrary>, #tpu.dimension_semantics<arbitrary>], iteration_bounds = array<i64: 2, 1>, scalar_prefetch = 0 : i64, scratch_operands = 4 : i64, tpu.core_type = #tpu.core_type<tc>, window_params = [{transform_indices = @transform_0, window_bounds = array<i64: 8, 128>}, {pipeline_mode = #tpu.pipeline_mode<synchronous>, transform_indices = @transform_1, window_bounds = array<i64: 1, 128>}, {pipeline_mode = #tpu.pipeline_mode<synchronous>, transform_indices = @transform_2, window_bounds = array<i64: 1, 128>}, {pipeline_mode = #tpu.pipeline_mode<synchronous>, transform_indices = @transform_3, window_bounds = array<i64: 128, 256>}, {pipeline_mode = #tpu.pipeline_mode<synchronous>, transform_indices = @transform_4, window_bounds = array<i64: 1, 256>}, {pipeline_mode = #tpu.pipeline_mode<synchronous>, transform_indices = @transform_5, window_bounds = array<i64: 1, 256>}, {transform_indices = @transform_6, window_bounds = array<i64: 1>}, {transform_indices = @transform_7, window_bounds = array<i64: 1, 8>}]} {
    %c0_i32 = arith.constant 0 : i32
    %0 = arith.cmpi eq, %arg0, %c0_i32 : i32
    %1 = arith.extui %0 : i1 to i32
    %c0_i32_0 = arith.constant 0 : i32
    %2 = arith.cmpi ne, %1, %c0_i32_0 : i32
    scf.if %2 {
      %c0_i32_5 = arith.constant 0 : i32
      %11 = arith.cmpi eq, %arg1, %c0_i32_5 : i32
      %12 = arith.extui %11 : i1 to i32
      %c0_i32_6 = arith.constant 0 : i32
      %13 = arith.cmpi ne, %12, %c0_i32_6 : i32
      scf.if %13 {
        %cst_20 = arith.constant 0.000000e+00 : f32
        %28 = vector.broadcast %cst_20 : f32 to vector<1x128xf32>
        %c0_21 = arith.constant 0 : index
        %c0_22 = arith.constant 0 : index
        %29 = vector.load %arg10[%c0_21, %c0_22] : memref<1x128xf32, #tpu.memory_space<vmem>>, vector<1x128xf32>
        tpu.vector_store %arg10[%c0_21, %c0_22], %28 {strides = array<i32>} : memref<1x128xf32, #tpu.memory_space<vmem>>, vector<1x128xf32>,
        %cst_23 = arith.constant 0.000000e+00 : f32
        %30 = vector.broadcast %cst_23 : f32 to vector<1x128xf32>
        %c0_24 = arith.constant 0 : index
        %c0_25 = arith.constant 0 : index
        %31 = vector.load %arg11[%c0_24, %c0_25] : memref<1x128xf32, #tpu.memory_space<vmem>>, vector<1x128xf32>
        tpu.vector_store %arg11[%c0_24, %c0_25], %30 {strides = array<i32>} : memref<1x128xf32, #tpu.memory_space<vmem>>, vector<1x128xf32>,
      } else {
      }
      %c0 = arith.constant 0 : index
      %c0_7 = arith.constant 0 : index
      %14 = vector.load %arg2[%c0, %c0_7] : memref<8x128xf32, #tpu.memory_space<vmem>>, vector<8x128xf32>
      %c0_8 = arith.constant 0 : index
      %c0_9 = arith.constant 0 : index
      %15 = vector.load %arg10[%c0_8, %c0_9] : memref<1x128xf32, #tpu.memory_space<vmem>>, vector<1x128xf32>
      %cst = arith.constant dense<0.000000e+00> : vector<128xf32>
      %16 = vector.multi_reduction <add>, %14, %cst [0] : vector<8x128xf32> to vector<128xf32>
      %17 = vector.shape_cast %16 : vector<128xf32> to vector<1x128xf32>
      %18 = arith.addf %15, %17 : vector<1x128xf32>
      %c0_10 = arith.constant 0 : index
      %c0_11 = arith.constant 0 : index
      %19 = vector.load %arg10[%c0_10, %c0_11] : memref<1x128xf32, #tpu.memory_space<vmem>>, vector<1x128xf32>
      tpu.vector_store %arg10[%c0_10, %c0_11], %18 {strides = array<i32>} : memref<1x128xf32, #tpu.memory_space<vmem>>, vector<1x128xf32>,
      %c0_12 = arith.constant 0 : index
      %c0_13 = arith.constant 0 : index
      %20 = vector.load %arg11[%c0_12, %c0_13] : memref<1x128xf32, #tpu.memory_space<vmem>>, vector<1x128xf32>
      %21 = arith.mulf %14, %14 : vector<8x128xf32>
      %cst_14 = arith.constant dense<0.000000e+00> : vector<128xf32>
      %22 = vector.multi_reduction <add>, %21, %cst_14 [0] : vector<8x128xf32> to vector<128xf32>
      %23 = vector.shape_cast %22 : vector<128xf32> to vector<1x128xf32>
      %24 = arith.addf %20, %23 : vector<1x128xf32>
      %c0_15 = arith.constant 0 : index
      %c0_16 = arith.constant 0 : index
      %25 = vector.load %arg11[%c0_15, %c0_16] : memref<1x128xf32, #tpu.memory_space<vmem>>, vector<1x128xf32>
      tpu.vector_store %arg11[%c0_15, %c0_16], %24 {strides = array<i32>} : memref<1x128xf32, #tpu.memory_space<vmem>>, vector<1x128xf32>,
      %cst_17 = arith.constant 0.000000e+00 : f32
      %26 = vector.broadcast %cst_17 : f32 to vector<1x8xf32>
      %c0_18 = arith.constant 0 : index
      %c0_19 = arith.constant 0 : index
      %27 = vector.load %arg9[%c0_18, %c0_19] : memref<1x8xf32, #tpu.memory_space<vmem>>, vector<1x8xf32>
      tpu.vector_store %arg9[%c0_18, %c0_19], %26 {strides = array<i32>} : memref<1x8xf32, #tpu.memory_space<vmem>>, vector<1x8xf32>,
    } else {
    }
    %c1_i32 = arith.constant 1 : i32
    %3 = arith.cmpi eq, %arg0, %c1_i32 : i32
    %c0_i32_1 = arith.constant 0 : i32
    %4 = arith.cmpi eq, %arg1, %c0_i32_1 : i32
    %5 = arith.andi %3, %4 : i1
    %6 = arith.extui %5 : i1 to i32
    %c0_i32_2 = arith.constant 0 : i32
    %7 = arith.cmpi ne, %6, %c0_i32_2 : i32
    scf.if %7 {
      %c0 = arith.constant 0 : index
      %c0_5 = arith.constant 0 : index
      %11 = vector.load %arg10[%c0, %c0_5] : memref<1x128xf32, #tpu.memory_space<vmem>>, vector<1x128xf32>
      %cst = arith.constant 1.250000e-01 : f32
      %12 = vector.broadcast %cst : f32 to vector<1x128xf32>
      %13 = arith.mulf %11, %12 : vector<1x128xf32>
      %c0_6 = arith.constant 0 : index
      %c0_7 = arith.constant 0 : index
      %14 = vector.load %arg11[%c0_6, %c0_7] : memref<1x128xf32, #tpu.memory_space<vmem>>, vector<1x128xf32>
      %cst_8 = arith.constant 1.250000e-01 : f32
      %15 = vector.broadcast %cst_8 : f32 to vector<1x128xf32>
      %16 = arith.mulf %14, %15 : vector<1x128xf32>
      %17 = arith.mulf %13, %13 : vector<1x128xf32>
      %18 = arith.subf %16, %17 : vector<1x128xf32>
      %cst_9 = arith.constant 0.000000e+00 : f32
      %19 = vector.broadcast %cst_9 : f32 to vector<1x128xf32>
      %20 = arith.maximumf %18, %19 : vector<1x128xf32>
      %c0_10 = arith.constant 0 : index
      %c0_11 = arith.constant 0 : index
      %21 = vector.load %arg3[%c0_10, %c0_11] : memref<1x128xf32, #tpu.memory_space<vmem>>, vector<1x128xf32>
      %cst_12 = arith.constant 9.99999996E-13 : f32
      %22 = vector.broadcast %cst_12 : f32 to vector<1x128xf32>
      %23 = arith.addf %20, %22 : vector<1x128xf32>
      %24 = math.rsqrt %23 : vector<1x128xf32>
      %25 = arith.mulf %21, %24 : vector<1x128xf32>
      %c0_13 = arith.constant 0 : index
      %c0_14 = arith.constant 0 : index
      %26 = vector.load %arg4[%c0_13, %c0_14] : memref<1x128xf32, #tpu.memory_space<vmem>>, vector<1x128xf32>
      %27 = arith.mulf %13, %25 : vector<1x128xf32>
      %28 = arith.subf %26, %27 : vector<1x128xf32>
      %c0_15 = arith.constant 0 : index
      %c0_16 = arith.constant 0 : index
      %29 = vector.load %arg12[%c0_15, %c0_16] : memref<1x128xf32, #tpu.memory_space<vmem>>, vector<1x128xf32>
      tpu.vector_store %arg12[%c0_15, %c0_16], %25 {strides = array<i32>} : memref<1x128xf32, #tpu.memory_space<vmem>>, vector<1x128xf32>,
      %c0_17 = arith.constant 0 : index
      %c0_18 = arith.constant 0 : index
      %30 = vector.load %arg6[%c0_17, %c0_18] : memref<1x256xf32, #tpu.memory_space<vmem>>, vector<1x256xf32>
      %31 = arith.truncf %28 : vector<1x128xf32> to vector<1x128xbf16>
      %c0_19 = arith.constant 0 : index
      %c0_20 = arith.constant 0 : index
      %32 = vector.load %arg5[%c0_19, %c0_20] : memref<128x256xbf16, #tpu.memory_space<vmem>>, vector<128x256xbf16>
      %cst_21 = arith.constant dense<0.000000e+00> : vector<1x256xf32>
      %33 = tpu.matmul %31, %32, %cst_21 {dimension_numbers = #tpu.dot_dimension_numbers<[1], [0], [0], [1], [0, 0, 1, 1], [], []>} : vector<1x128xbf16>, vector<128x256xbf16>, vector<1x256xf32> -> vector<1x256xf32>
      %34 = arith.addf %30, %33 : vector<1x256xf32>
      %c0_22 = arith.constant 0 : index
      %c0_23 = arith.constant 0 : index
      %35 = vector.load %arg13[%c0_22, %c0_23] : memref<1x256xf32, #tpu.memory_space<vmem>>, vector<1x256xf32>
      tpu.vector_store %arg13[%c0_22, %c0_23], %34 {strides = array<i32>} : memref<1x256xf32, #tpu.memory_space<vmem>>, vector<1x256xf32>,
    } else {
    }
    %c1_i32_3 = arith.constant 1 : i32
    %8 = arith.cmpi eq, %arg0, %c1_i32_3 : i32
    %9 = arith.extui %8 : i1 to i32
    %c0_i32_4 = arith.constant 0 : i32
    %10 = arith.cmpi ne, %9, %c0_i32_4 : i32
    scf.if %10 {
      %c0 = arith.constant 0 : index
      %c0_5 = arith.constant 0 : index
      %11 = vector.load %arg2[%c0, %c0_5] : memref<8x128xf32, #tpu.memory_space<vmem>>, vector<8x128xf32>
      %c0_6 = arith.constant 0 : index
      %c0_7 = arith.constant 0 : index
      %12 = vector.load %arg12[%c0_6, %c0_7] : memref<1x128xf32, #tpu.memory_space<vmem>>, vector<1x128xf32>
      %13 = vector.broadcast %12 : vector<1x128xf32> to vector<8x128xf32>
      %14 = arith.mulf %11, %13 : vector<8x128xf32>
      %15 = arith.truncf %14 : vector<8x128xf32> to vector<8x128xbf16>
      %c0_8 = arith.constant 0 : index
      %c0_9 = arith.constant 0 : index
      %16 = vector.load %arg5[%c0_8, %c0_9] : memref<128x256xbf16, #tpu.memory_space<vmem>>, vector<128x256xbf16>
      %cst = arith.constant dense<0.000000e+00> : vector<8x256xf32>
      %17 = tpu.matmul %15, %16, %cst {dimension_numbers = #tpu.dot_dimension_numbers<[1], [0], [0], [1], [0, 0, 1, 1], [], []>} : vector<8x128xbf16>, vector<128x256xbf16>, vector<8x256xf32> -> vector<8x256xf32>
      %c0_10 = arith.constant 0 : index
      %c0_11 = arith.constant 0 : index
      %18 = vector.load %arg13[%c0_10, %c0_11] : memref<1x256xf32, #tpu.memory_space<vmem>>, vector<1x256xf32>
      %19 = vector.broadcast %18 : vector<1x256xf32> to vector<8x256xf32>
      %20 = arith.addf %17, %19 : vector<8x256xf32>
      %cst_12 = arith.constant 0.000000e+00 : f32
      %21 = vector.broadcast %cst_12 : f32 to vector<8x256xf32>
      %22 = arith.maximumf %20, %21 : vector<8x256xf32>
      %c0_13 = arith.constant 0 : index
      %c0_14 = arith.constant 0 : index
      %23 = vector.load %arg7[%c0_13, %c0_14] : memref<1x256xf32, #tpu.memory_space<vmem>>, vector<1x256xf32>
      %cst_15 = arith.constant dense<0.000000e+00> : vector<1x8xf32>
      %24 = tpu.matmul %23, %22, %cst_15 {dimension_numbers = #tpu.dot_dimension_numbers<[1], [1], [0], [0], [0, 0, 1, 0], [], []>} : vector<1x256xf32>, vector<8x256xf32>, vector<1x8xf32> -> vector<1x8xf32>
      %c0_16 = arith.constant 0 : index
      %25 = memref.load %arg8[%c0_16] : memref<1xf32, #tpu.memory_space<smem>>
      %26 = vector.broadcast %25 : f32 to vector<1x8xf32>
      %27 = arith.addf %24, %26 : vector<1x8xf32>
      %c0_17 = arith.constant 0 : index
      %c0_18 = arith.constant 0 : index
      %28 = vector.load %arg9[%c0_17, %c0_18] : memref<1x8xf32, #tpu.memory_space<vmem>>, vector<1x8xf32>
      tpu.vector_store %arg9[%c0_17, %c0_18], %27 {strides = array<i32>} : memref<1x8xf32, #tpu.memory_space<vmem>>, vector<1x8xf32>,
    } else {
    }
    return
  }
  func.func @transform_0(%arg0: i32, %arg1: i32) -> (i32, i32) {
    %c0_i32 = arith.constant 0 : i32
    %c0_i32_0 = arith.constant 0 : i32
    return %arg1, %c0_i32 : i32, i32
  }
  func.func @transform_1(%arg0: i32, %arg1: i32) -> (i32, i32) {
    %c0_i32 = arith.constant 0 : i32
    %c0_i32_0 = arith.constant 0 : i32
    %c0_i32_1 = arith.constant 0 : i32
    return %c0_i32, %c0_i32_0 : i32, i32
  }
  func.func @transform_2(%arg0: i32, %arg1: i32) -> (i32, i32) {
    %c0_i32 = arith.constant 0 : i32
    %c0_i32_0 = arith.constant 0 : i32
    %c0_i32_1 = arith.constant 0 : i32
    return %c0_i32, %c0_i32_0 : i32, i32
  }
  func.func @transform_3(%arg0: i32, %arg1: i32) -> (i32, i32) {
    %c0_i32 = arith.constant 0 : i32
    %c0_i32_0 = arith.constant 0 : i32
    %c0_i32_1 = arith.constant 0 : i32
    return %c0_i32, %c0_i32_0 : i32, i32
  }
  func.func @transform_4(%arg0: i32, %arg1: i32) -> (i32, i32) {
    %c0_i32 = arith.constant 0 : i32
    %c0_i32_0 = arith.constant 0 : i32
    %c0_i32_1 = arith.constant 0 : i32
    return %c0_i32, %c0_i32_0 : i32, i32
  }
  func.func @transform_5(%arg0: i32, %arg1: i32) -> (i32, i32) {
    %c0_i32 = arith.constant 0 : i32
    %c0_i32_0 = arith.constant 0 : i32
    %c0_i32_1 = arith.constant 0 : i32
    return %c0_i32, %c0_i32_0 : i32, i32
  }
  func.func @transform_6(%arg0: i32, %arg1: i32) -> i32 {
    %c0_i32 = arith.constant 0 : i32
    %c0_i32_0 = arith.constant 0 : i32
    return %c0_i32 : i32
  }
  func.func @transform_7(%arg0: i32, %arg1: i32) -> (i32, i32) {
    %c0_i32 = arith.constant 0 : i32
    %c0_i32_0 = arith.constant 0 : i32
    return %c0_i32, %arg1 : i32, i32
  }
}

</mosaic_0001>

<llo_original>
// kernel: tpu_custom_call.1
$region0: #{tpu_custom_call.1}
  #allocation0 [shape = 'u32[]', space=smem, size = 0x4, offset = 0x4, fixed_abs, tag = 'smem constant byte address 0x4 - core index']
  #allocation1 [shape = 'u32[72,128]{1,0:T(1,128)}', space=vmem, size = 0x9000, scoped, tag = 'internal scratch']
  #allocation2 [shape = 'f32[1,128]{1,0:T(1,128)}', space=vmem, size = 0x200, scoped, tag = 'scratch operand']
  #allocation3 [shape = 'f32[1,128]{1,0:T(1,128)}', space=vmem, size = 0x200, scoped, tag = 'scratch operand']
  #allocation4 [shape = 'f32[1,128]{1,0:T(1,128)}', space=vmem, size = 0x200, scoped, tag = 'scratch operand']
  #allocation5 [shape = 'f32[1,256]{1,0:T(1,128)}', space=vmem, size = 0x400, scoped, tag = 'scratch operand']
  #allocation6 [shape = 'f32[1]{0:T(128)S(6)}', space=smem, size = 0x200, scoped, tag = 'scoped memory for tpu_custom_call.1']
  %s0 = inlined_call_operand.hbm [shape: f32[8,128], index: 0, kind: input, shape index: {}]
  %s1 = inlined_call_operand.hbm [shape: f32[1,128], index: 1, kind: input, shape index: {}]
  %s2 = inlined_call_operand.hbm [shape: f32[1,128], index: 2, kind: input, shape index: {}]
  %s3 = inlined_call_operand.hbm [shape: bf16[128,256], index: 3, kind: input, shape index: {}]
  %s4 = inlined_call_operand.vmem [shape: f32[1,256], index: 4, kind: input, shape index: {}]
  %s5 = inlined_call_operand.vmem [shape: f32[1,256], index: 5, kind: input, shape index: {}]
  %s6 = inlined_call_operand.<no memory space> [shape: f32[1], index: 6, kind: input, shape index: {}]
  %s7 = inlined_call_operand.hbm [shape: f32[1,8], index: 7, kind: output, shape index: {}]
  %s8 = sld [smem:[#allocation0]]
  $region93: #{tpu_custom_call.1} parent=0
    _
  %s10 = ssub.s32 1, %s8
  %s11 = scalar_select 0, %s10, %s8
  %12 = sst [smem:[#allocation6]] %s6
  $region1: #{tpu_custom_call.1} parent=0
    #allocation7 [shape = 'u8[4096]{0}', space=vmem, size = 0x1000, scoped, tag = 'input window, operand 0, single buffered']
    #allocation8 [shape = 's32[2]{0}', space=sflag, size = 0x8, scoped, tag = 'scoped memory for tpu_custom_call.1']
    #allocation9 [shape = 's32[2]{0}', space=sflag, size = 0x8, scoped, tag = 'scoped memory for tpu_custom_call.1']
    #allocation10 [shape = 'u8[512]{0}', space=vmem, size = 0x400, scoped, tag = 'input window, operand 1, single buffered']
    #allocation11 [shape = 's32[1]{0}', space=sflag, size = 0x4, scoped, tag = 'scoped memory for tpu_custom_call.1']
    #allocation12 [shape = 'u8[512]{0}', space=vmem, size = 0x400, scoped, tag = 'input window, operand 2, single buffered']
    #allocation13 [shape = 'u8[65536]{0}', space=vmem, size = 0x10000, scoped, tag = 'input window, operand 3, single buffered']
    #allocation14 [shape = 's32[1]{0}', space=sflag, size = 0x4, scoped, tag = 'scoped memory for tpu_custom_call.1']
    #allocation15 [shape = 'u8[512]{0}', space=vmem, size = 0x400, scoped, tag = 'output window, operand 0, single buffered']
    %13 = vsyncpa [#allocation8], 0
    %14 = vsyncpa [#allocation11], 0
    %15 = vsyncpa [#allocation14], 0
    %16 = vsyncpa [#allocation9], 0
    loop: start=0, step=1, limit=4
    $region2: #{tpu_custom_call.1} parent=1 // loop_pre_header
      _
    $region3: #{tpu_custom_call.1} parent=1 // loop_header
      %s18 = sphi 0, %s22
      %p19 = scmp.ge.s32.totalorder %s18, 4
      %s25 = sphi 0, %s37
      %s26 = sphi 0, %s33
      %s27 = sphi 0, %s25
      %s28 = sphi 0, %s26
      %s29 = sphi 0, %s27
      %s30 = sphi 0, %s28
      %s40 = sphi 0, %s42
      %s43 = sphi 0, %s40
      %s44 = sphi 0, %s43
      %s60 = sphi 0, %s44
      %s64 = sphi 0, %s64
      %s66 = sphi 0, %s64
      %s67 = sphi 0, %s66
      %s81 = sphi 0, %s67
      %s85 = sphi 0, %s85
      %s87 = sphi 0, %s85
      %s88 = sphi 0, %s87
      %s102 = sphi 0, %s88
      %s106 = sphi 0, %s106
      %s108 = sphi 0, %s106
      %s109 = sphi 0, %s108
      %s123 = sphi 0, %s109
      %s127 = sphi 0, %s127
      %s129 = sphi 0, %s127
      %s130 = sphi 0, %s129
      %s144 = sphi 0, %s130
      %s148 = sphi 0, %s148
      %s150 = sphi 0, %s148
      %s151 = sphi 0, %s150
      %s165 = sphi 0, %s151
      %s169 = sphi 0, %s169
      %s171 = sphi 0, %s169
      %s172 = sphi 0, %s171
      %s186 = sphi 0, %s172
      %s192 = sphi 0, %s194
      %s195 = sphi 0, %s192
      %s196 = sphi 0, %s195
      %s212 = sphi 0, %s196
    $region4: #{tpu_custom_call.1} parent=1 // loop_header_branch
      %21 = sbr.rel (%p19) target = $region8
    $region5: #{tpu_custom_call.1} parent=1 // loop_body
      %s23 = ssub.s32 %s18, 1
      %s24 = ssub.s32 %s18, 2
      %s31 = sadd.s32 1, %s26
      %p32 = scmp.ge.s32.totalorder %s31, 1
      %s33 = scalar_select %p32, 0, %s31
      %s34 = sadd.s32 1, %s25
      %s35 = scalar_select %p32, %s34, %s25
      %p36 = scmp.ge.s32.totalorder %s35, 2
      %s37 = scalar_select %p36, 0, %s35
      %s38 = ssub.s32 %s26, %s33
      %p39 = scmp.eq.s32.totalorder %s38, 0
      %s41 = sadd.s32 %s40, 1
      %s42 = scalar_select %p39, %s40, %s41
      %p45 = pneg %p39
      %p46 = scmp.eq.s32.totalorder %s18, 1
      %p47 = por %p45, %p46
      %p48 = scmp.ne.s32.totalorder %s40, %s43
      %p49 = scmp.eq.s32.totalorder %s18, 0
      %p50 = por %p48, %p49
      %p51 = scmp.ne.s32.totalorder %s40, %s43
      %p52 = scmp.eq.s32.totalorder %s23, 1
      %p53 = por %p51, %p52
      %p54 = scmp.ne.s32.totalorder %s43, %s44
      %p55 = scmp.eq.s32.totalorder %s23, 0
      %p56 = por %p54, %p55
      %p57 = scmp.ne.s32.totalorder %s43, %s44
      %p58 = scmp.eq.s32.totalorder %s24, 1
      %p59 = por %p57, %p58
      %p61 = scmp.ne.s32.totalorder %s44, %s60
      %p62 = scmp.eq.s32.totalorder %s24, 0
      %p63 = por %p61, %p62
      %s65 = sadd.s32 %s64, 1
      %p68 = scmp.eq.s32.totalorder %s18, 1
      %p69 = scmp.ne.s32.totalorder %s64, %s66
      %p70 = scmp.eq.s32.totalorder %s18, 0
      %p71 = por %p69, %p70
      %p72 = scmp.ne.s32.totalorder %s64, %s66
      %p73 = scmp.eq.s32.totalorder %s23, 1
      %p74 = por %p72, %p73
      %p75 = scmp.ne.s32.totalorder %s66, %s67
      %p76 = scmp.eq.s32.totalorder %s23, 0
      %p77 = por %p75, %p76
      %p78 = scmp.ne.s32.totalorder %s66, %s67
      %p79 = scmp.eq.s32.totalorder %s24, 1
      %p80 = por %p78, %p79
      %p82 = scmp.ne.s32.totalorder %s67, %s81
      %p83 = scmp.eq.s32.totalorder %s24, 0
      %p84 = por %p82, %p83
      %s86 = sadd.s32 %s85, 1
      %p89 = scmp.eq.s32.totalorder %s18, 1
      %p90 = scmp.ne.s32.totalorder %s85, %s87
      %p91 = scmp.eq.s32.totalorder %s18, 0
      %p92 = por %p90, %p91
      %p93 = scmp.ne.s32.totalorder %s85, %s87
      %p94 = scmp.eq.s32.totalorder %s23, 1
      %p95 = por %p93, %p94
      %p96 = scmp.ne.s32.totalorder %s87, %s88
      %p97 = scmp.eq.s32.totalorder %s23, 0
      %p98 = por %p96, %p97
      %p99 = scmp.ne.s32.totalorder %s87, %s88
      %p100 = scmp.eq.s32.totalorder %s24, 1
      %p101 = por %p99, %p100
      %p103 = scmp.ne.s32.totalorder %s88, %s102
      %p104 = scmp.eq.s32.totalorder %s24, 0
      %p105 = por %p103, %p104
      %s107 = sadd.s32 %s106, 1
      %p110 = scmp.eq.s32.totalorder %s18, 1
      %p111 = scmp.ne.s32.totalorder %s106, %s108
      %p112 = scmp.eq.s32.totalorder %s18, 0
      %p113 = por %p111, %p112
      %p114 = scmp.ne.s32.totalorder %s106, %s108
      %p115 = scmp.eq.s32.totalorder %s23, 1
      %p116 = por %p114, %p115
      %p117 = scmp.ne.s32.totalorder %s108, %s109
      %p118 = scmp.eq.s32.totalorder %s23, 0
      %p119 = por %p117, %p118
      %p120 = scmp.ne.s32.totalorder %s108, %s109
      %p121 = scmp.eq.s32.totalorder %s24, 1
      %p122 = por %p120, %p121
      %p124 = scmp.ne.s32.totalorder %s109, %s123
      %p125 = scmp.eq.s32.totalorder %s24, 0
      %p126 = por %p124, %p125
      %s128 = sadd.s32 %s127, 1
      %p131 = scmp.eq.s32.totalorder %s18, 1
      %p132 = scmp.ne.s32.totalorder %s127, %s129
      %p133 = scmp.eq.s32.totalorder %s18, 0
      %p134 = por %p132, %p133
      %p135 = scmp.ne.s32.totalorder %s127, %s129
      %p136 = scmp.eq.s32.totalorder %s23, 1
      %p137 = por %p135, %p136
      %p138 = scmp.ne.s32.totalorder %s129, %s130
      %p139 = scmp.eq.s32.totalorder %s23, 0
      %p140 = por %p138, %p139
      %p141 = scmp.ne.s32.totalorder %s129, %s130
      %p142 = scmp.eq.s32.totalorder %s24, 1
      %p143 = por %p141, %p142
      %p145 = scmp.ne.s32.totalorder %s130, %s144
      %p146 = scmp.eq.s32.totalorder %s24, 0
      %p147 = por %p145, %p146
      %s149 = sadd.s32 %s148, 1
      %p152 = scmp.eq.s32.totalorder %s18, 1
      %p153 = scmp.ne.s32.totalorder %s148, %s150
      %p154 = scmp.eq.s32.totalorder %s18, 0
      %p155 = por %p153, %p154
      %p156 = scmp.ne.s32.totalorder %s148, %s150
      %p157 = scmp.eq.s32.totalorder %s23, 1
      %p158 = por %p156, %p157
      %p159 = scmp.ne.s32.totalorder %s150, %s151
      %p160 = scmp.eq.s32.totalorder %s23, 0
      %p161 = por %p159, %p160
      %p162 = scmp.ne.s32.totalorder %s150, %s151
      %p163 = scmp.eq.s32.totalorder %s24, 1
      %p164 = por %p162, %p163
      %p166 = scmp.ne.s32.totalorder %s151, %s165
      %p167 = scmp.eq.s32.totalorder %s24, 0
      %p168 = por %p166, %p167
      %s170 = sadd.s32 %s169, 1
      %p173 = scmp.eq.s32.totalorder %s18, 1
      %p174 = scmp.ne.s32.totalorder %s169, %s171
      %p175 = scmp.eq.s32.totalorder %s18, 0
      %p176 = por %p174, %p175
      %p177 = scmp.ne.s32.totalorder %s169, %s171
      %p178 = scmp.eq.s32.totalorder %s23, 1
      %p179 = por %p177, %p178
      %p180 = scmp.ne.s32.totalorder %s171, %s172
      %p181 = scmp.eq.s32.totalorder %s23, 0
      %p182 = por %p180, %p181
      %p183 = scmp.ne.s32.totalorder %s171, %s172
      %p184 = scmp.eq.s32.totalorder %s24, 1
      %p185 = por %p183, %p184
      %p187 = scmp.ne.s32.totalorder %s172, %s186
      %p188 = scmp.eq.s32.totalorder %s24, 0
      %p189 = por %p187, %p188
      %s190 = ssub.s32 %s26, %s33
      %p191 = scmp.eq.s32.totalorder %s190, 0
      %s193 = sadd.s32 %s192, 1
      %s194 = scalar_select %p191, %s192, %s193
      %p197 = pneg %p191
      %p198 = scmp.eq.s32.totalorder %s18, 1
      %p199 = por %p197, %p198
      %p200 = scmp.ne.s32.totalorder %s192, %s195
      %p201 = scmp.eq.s32.totalorder %s18, 0
      %p202 = por %p200, %p201
      %p203 = scmp.ne.s32.totalorder %s192, %s195
      %p204 = scmp.eq.s32.totalorder %s23, 1
      %p205 = por %p203, %p204
      %p206 = scmp.ne.s32.totalorder %s195, %s196
      %p207 = scmp.eq.s32.totalorder %s23, 0
      %p208 = por %p206, %p207
      %p209 = scmp.ne.s32.totalorder %s195, %s196
      %p210 = scmp.eq.s32.totalorder %s24, 1
      %p211 = por %p209, %p210
      %p213 = scmp.ne.s32.totalorder %s196, %s212
      %p214 = scmp.eq.s32.totalorder %s24, 0
      %p215 = por %p213, %p214
      %p216 = scmp.le.s32.totalorder 1, %s18
      %p217 = scmp.lt.s32.totalorder %s18, 3
      %p218 = pnand %p216, %p217
      %p219 = pneg %p218
      // Predicated region
      $region9: #{tpu_custom_call.1} parent=5 // pred_check
        _
      $region10: #{tpu_custom_call.1} parent=5 // pred_check_branch
        %221 = sbr.rel (%p218) target = $region12
      $region11: #{tpu_custom_call.1} parent=5 // pred_region
        %s222 = ssub.s32 %s18, 1
        // Predicated region
        $region13: #{tpu_custom_call.1} parent=11 // pred_check
          %p223 = pneg %p56
        $region14: #{tpu_custom_call.1} parent=11 // pred_check_branch
          %225 = sbr.rel (%p223) target = $region16
        $region15: #{tpu_custom_call.1} parent=11 // pred_region
          %227 = vsyncadd [#allocation8], 0
          %s228 = smul.addr %s28, 8
          %s229 = scalar_lea.hbm %s0, %s228
          %s231 = sshll.u32 %s229, 4
          %s232 = int_to_ptr.hbm [resolvable:$true] %s231
          %s233 = sshll.u32 [#allocation7], 4
          %s234 = int_to_ptr.vmem [resolvable:$true] %s233
          %236 = dma.hbm_to_vmem [thread:$0]  %s232, 128, %s234, [#allocation8]
        $region16: #{tpu_custom_call.1} parent=11 // pred_fallthru
          _
        // Predicated region
        $region17: #{tpu_custom_call.1} parent=11 // pred_check
          %p237 = pneg %p77
        $region18: #{tpu_custom_call.1} parent=11 // pred_check_branch
          %239 = sbr.rel (%p237) target = $region20
        $region19: #{tpu_custom_call.1} parent=11 // pred_region
          %241 = vsyncadd [#allocation11], 0
          %s243 = sshll.u32 %s1, 4
          %s244 = int_to_ptr.hbm [resolvable:$true] %s243
          %s245 = sshll.u32 [#allocation10], 4
          %s246 = int_to_ptr.vmem [resolvable:$true] %s245
          %248 = dma.hbm_to_vmem [thread:$0]  %s244, 16, %s246, [#allocation11]
        $region20: #{tpu_custom_call.1} parent=11 // pred_fallthru
          _
        // Predicated region
        $region21: #{tpu_custom_call.1} parent=11 // pred_check
          %p249 = pneg %p98
        $region22: #{tpu_custom_call.1} parent=11 // pred_check_branch
          %251 = sbr.rel (%p249) target = $region24
        $region23: #{tpu_custom_call.1} parent=11 // pred_region
          %253 = vsyncadd [#allocation11], 0
          %s255 = sshll.u32 %s2, 4
          %s256 = int_to_ptr.hbm [resolvable:$true] %s255
          %s257 = sshll.u32 [#allocation12], 4
          %s258 = int_to_ptr.vmem [resolvable:$true] %s257
          %260 = dma.hbm_to_vmem [thread:$0]  %s256, 16, %s258, [#allocation11]
        $region24: #{tpu_custom_call.1} parent=11 // pred_fallthru
          _
        // Predicated region
        $region25: #{tpu_custom_call.1} parent=11 // pred_check
          %p261 = pneg %p119
        $region26: #{tpu_custom_call.1} parent=11 // pred_check_branch
          %263 = sbr.rel (%p261) target = $region28
        $region27: #{tpu_custom_call.1} parent=11 // pred_region
          %265 = vsyncadd [#allocation14], 0
          %s266 = sshll.u32 %s3, 4
          %s267 = int_to_ptr.hbm [resolvable:$true] %s266
          %s268 = sshll.u32 [#allocation13], 4
          %s269 = int_to_ptr.vmem [resolvable:$true] %s268
          %274 = dma.hbm_to_vmem [thread:$0]  %s267, 2048, %s269, [#allocation14], 128, 128, 8
        $region28: #{tpu_custom_call.1} parent=11 // pred_fallthru
          _
        // Predicated region
        $region29: #{tpu_custom_call.1} parent=11 // pred_check
          %p275 = pneg %p140
        $region30: #{tpu_custom_call.1} parent=11 // pred_check_branch
          %277 = sbr.rel (%p275) target = $region32
        $region31: #{tpu_custom_call.1} parent=11 // pred_region
          _
        $region32: #{tpu_custom_call.1} parent=11 // pred_fallthru
          _
        // Predicated region
        $region33: #{tpu_custom_call.1} parent=11 // pred_check
          %p278 = pneg %p161
        $region34: #{tpu_custom_call.1} parent=11 // pred_check_branch
          %280 = sbr.rel (%p278) target = $region36
        $region35: #{tpu_custom_call.1} parent=11 // pred_region
          _
        $region36: #{tpu_custom_call.1} parent=11 // pred_fallthru
          _
        // Predicated region
        $region37: #{tpu_custom_call.1} parent=11 // pred_check
          %p281 = pneg %p182
        $region38: #{tpu_custom_call.1} parent=11 // pred_check_branch
          %283 = sbr.rel (%p281) target = $region40
        $region39: #{tpu_custom_call.1} parent=11 // pred_region
          _
        $region40: #{tpu_custom_call.1} parent=11 // pred_fallthru
          _
      $region12: #{tpu_custom_call.1} parent=5 // pred_fallthru
        _
      %p284 = scmp.lt.s32.totalorder %s18, 2
      // Predicated region
      $region41: #{tpu_custom_call.1} parent=5 // pred_check
        %p285 = pneg %p284
      $region42: #{tpu_custom_call.1} parent=5 // pred_check_branch
        %287 = sbr.rel (%p285) target = $region44
      $region43: #{tpu_custom_call.1} parent=5 // pred_region
        _
      $region44: #{tpu_custom_call.1} parent=5 // pred_fallthru
        _
      %p288 = scmp.le.s32.totalorder 1, %s18
      %p289 = scmp.lt.s32.totalorder %s18, 3
      %p290 = pnand %p288, %p289
      %p291 = pneg %p290
      // Predicated region
      $region45: #{tpu_custom_call.1} parent=5 // pred_check
        _
      $region46: #{tpu_custom_call.1} parent=5 // pred_check_branch
        %293 = sbr.rel (%p290) target = $region48
      $region47: #{tpu_custom_call.1} parent=5 // pred_region
        %s294 = ssub.s32 %s18, 1
        // Predicated region
        $region49: #{tpu_custom_call.1} parent=47 // pred_check
          %p295 = pneg %p56
        $region50: #{tpu_custom_call.1} parent=47 // pred_check_branch
          %297 = sbr.rel (%p295) target = $region52
        $region51: #{tpu_custom_call.1} parent=47 // pred_region
          %299 = dma.done [#allocation8], 128
        $region52: #{tpu_custom_call.1} parent=47 // pred_fallthru
          _
        // Predicated region
        $region53: #{tpu_custom_call.1} parent=47 // pred_check
          %p300 = pneg %p77
        $region54: #{tpu_custom_call.1} parent=47 // pred_check_branch
          %302 = sbr.rel (%p300) target = $region56
        $region55: #{tpu_custom_call.1} parent=47 // pred_region
          %304 = dma.done [#allocation11], 16
        $region56: #{tpu_custom_call.1} parent=47 // pred_fallthru
          _
        // Predicated region
        $region57: #{tpu_custom_call.1} parent=47 // pred_check
          %p305 = pneg %p98
        $region58: #{tpu_custom_call.1} parent=47 // pred_check_branch
          %307 = sbr.rel (%p305) target = $region60
        $region59: #{tpu_custom_call.1} parent=47 // pred_region
          %309 = dma.done [#allocation11], 16
        $region60: #{tpu_custom_call.1} parent=47 // pred_fallthru
          _
        // Predicated region
        $region61: #{tpu_custom_call.1} parent=47 // pred_check
          %p310 = pneg %p119
        $region62: #{tpu_custom_call.1} parent=47 // pred_check_branch
          %312 = sbr.rel (%p310) target = $region64
        $region63: #{tpu_custom_call.1} parent=47 // pred_region
          %314 = dma.done [#allocation14], 2048
        $region64: #{tpu_custom_call.1} parent=47 // pred_fallthru
          _
        %p315 = pneg %p56
        %p316 = pneg %p53
        %p317 = pneg %p77
        %p318 = pneg %p74
        %p319 = pneg %p98
        %p320 = pneg %p95
        %p321 = pneg %p119
        %p322 = pneg %p116
        %p323 = pneg %p140
        %p324 = pneg %p137
        %p325 = pneg %p161
        %p326 = pneg %p158
        %p327 = pneg %p182
        %p328 = pneg %p179
        %p329 = pneg %p208
        %p330 = pneg %p205
        %p331 = scmp.eq.s32.totalorder %s27, 0
        // Predicated region
        $region65: #{tpu_custom_call.1} parent=47 // pred_check
          %p332 = pneg %p331
        $region66: #{tpu_custom_call.1} parent=47 // pred_check_branch
          %334 = sbr.rel (%p332) target = $region68
        $region67: #{tpu_custom_call.1} parent=47 // pred_region
          %p335 = scmp.eq.s32.totalorder %s28, 0
          // Predicated region
          $region69: #{tpu_custom_call.1} parent=67 // pred_check
            %p336 = pneg %p335
          $region70: #{tpu_custom_call.1} parent=67 // pred_check_branch
            %338 = sbr.rel (%p336) target = $region72
          $region71: #{tpu_custom_call.1} parent=67 // pred_region
            %339 = vst [vmem:[#allocation2] sm:$0x1] 0.0
            %340 = vst [vmem:[#allocation3] sm:$0x1] 0.0
          $region72: #{tpu_custom_call.1} parent=67 // pred_fallthru
            _
          %v341 = vld [vmem:[#allocation7] sm:$0xff]
          %v342 = vld [vmem:[#allocation2] sm:$0x1]
          %v343 = vrot.slane %v341, 4
          %v344 = vadd.f32 %v341, %v343
          %v345 = vrot.slane %v344, 2
          %v346 = vadd.f32 %v344, %v345
          %v347 = vrot.slane %v346, 1
          %v348 = vadd.f32 %v346, %v347
          %v349 = vadd.f32 %v342, %v348
          %350 = vst [vmem:[#allocation2] sm:$0x1] %v349
          %v351 = vld [vmem:[#allocation3] sm:$0x1]
          %v352 = vmul.f32 %v341, %v341
          %v353 = vrot.slane %v352, 4
          %v354 = vadd.f32 %v352, %v353
          %v355 = vrot.slane %v354, 2
          %v356 = vadd.f32 %v354, %v355
          %v357 = vrot.slane %v356, 1
          %v358 = vadd.f32 %v356, %v357
          %v359 = vadd.f32 %v351, %v358
          %360 = vst [vmem:[#allocation3] sm:$0x1] %v359
          %vm361 = vcmask 57344
          %362 = vst.msk [vmem:[#allocation15] sm:$0x1] %vm361, 0.0
        $region68: #{tpu_custom_call.1} parent=47 // pred_fallthru
          _
        %p363 = scmp.eq.s32.totalorder %s27, 1
        %p364 = scmp.eq.s32.totalorder %s28, 0
        %p365 = pnand %p363, %p364
        %p366 = pneg %p365
        // Predicated region
        $region73: #{tpu_custom_call.1} parent=47 // pred_check
          _
        $region74: #{tpu_custom_call.1} parent=47 // pred_check_branch
          %368 = sbr.rel (%p365) target = $region76
        $region75: #{tpu_custom_call.1} parent=47 // pred_region
          %v369 = vld [vmem:[#allocation2] sm:$0x1]
          %v370 = vmul.f32 %v369, 0.125
          %v371 = vld [vmem:[#allocation3] sm:$0x1]
          %v372 = vmul.f32 %v371, 0.125
          %v373 = vmul.f32 %v370, %v370
          %v374 = vsub.f32 %v372, %v373
          %v375 = vmax.f32 %v374, 0.0
          %v376 = vld [vmem:[#allocation10] sm:$0x1]
          %v377 = vadd.f32 %v375, 1e-12
          %v378 = vrsqrt.pop %v377
          %v379 = vmul.f32 %v378, %v377
          %v380 = vmul.f32 %v379, %v378
          %v381 = vmul.f32 0.5, %v380
          %v382 = vsub.f32 1.5, %v381
          %v383 = vmul.f32 %v378, %v382
          %vm384 = vweird.f32 %v377
          %vm385 = vweird.f32 %v378
          %vm386 = vmor %vm384, %vm385
          %v387 = vsel %vm386, %v378, %v383
          %v388 = vmul.f32 %v376, %v387
          %v389 = vld [vmem:[#allocation12] sm:$0x1]
          %v390 = vmul.f32 %v370, %v388
          %v391 = vsub.f32 %v389, %v390
          %392 = vst [vmem:[#allocation4] sm:$0x1] %v388
          %v393 = vld [vmem:[%s4] sm:$0x3]
          %v394 = vpack.c.bf16 %v391, %v391
          %v395 = vld [vmem:[#allocation13] sm:$0xff]
          %v396 = vld [vmem:[#allocation13 + $0x8] sm:$0xff]
          %v397 = vld [vmem:[#allocation13 + $0x10] sm:$0xff]
          %v398 = vld [vmem:[#allocation13 + $0x18] sm:$0xff]
          %v399 = vld [vmem:[#allocation13 + $0x20] sm:$0xff]
          %v400 = vld [vmem:[#allocation13 + $0x28] sm:$0xff]
          %v401 = vld [vmem:[#allocation13 + $0x30] sm:$0xff]
          %v402 = vld [vmem:[#allocation13 + $0x38] sm:$0xff]
          %v403 = vld [vmem:[#allocation13 + $0x40] sm:$0xff]
          %v404 = vld [vmem:[#allocation13 + $0x48] sm:$0xff]
          %v405 = vld [vmem:[#allocation13 + $0x50] sm:$0xff]
          %v406 = vld [vmem:[#allocation13 + $0x58] sm:$0xff]
          %v407 = vld [vmem:[#allocation13 + $0x60] sm:$0xff]
          %v408 = vld [vmem:[#allocation13 + $0x68] sm:$0xff]
          %v409 = vld [vmem:[#allocation13 + $0x70] sm:$0xff]
          %v410 = vld [vmem:[#allocation13 + $0x78] sm:$0xff]
          %v427 = vunpack.c.l.b16 %v395
          %v428 = vunpack.c.h.b16 %v395
          %v429 = vunpack.c.l.b16 %v396
          %v430 = vunpack.c.h.b16 %v396
          %v431 = vunpack.c.l.b16 %v397
          %v432 = vunpack.c.h.b16 %v397
          %v433 = vunpack.c.l.b16 %v398
          %v434 = vunpack.c.h.b16 %v398
          %v435 = vunpack.c.l.b16 %v399
          %v436 = vunpack.c.h.b16 %v399
          %v437 = vunpack.c.l.b16 %v400
          %v438 = vunpack.c.h.b16 %v400
          %v439 = vunpack.c.l.b16 %v401
          %v440 = vunpack.c.h.b16 %v401
          %v441 = vunpack.c.l.b16 %v402
          %v442 = vunpack.c.h.b16 %v402
          %v443 = vunpack.c.l.b16 %v403
          %v444 = vunpack.c.h.b16 %v403
          %v445 = vunpack.c.l.b16 %v404
          %v446 = vunpack.c.h.b16 %v404
          %v447 = vunpack.c.l.b16 %v405
          %v448 = vunpack.c.h.b16 %v405
          %v449 = vunpack.c.l.b16 %v406
          %v450 = vunpack.c.h.b16 %v406
          %v451 = vunpack.c.l.b16 %v407
          %v452 = vunpack.c.h.b16 %v407
          %v453 = vunpack.c.l.b16 %v408
          %v454 = vunpack.c.h.b16 %v408
          %v455 = vunpack.c.l.b16 %v409
          %v456 = vunpack.c.h.b16 %v409
          %v457 = vunpack.c.l.b16 %v410
          %v458 = vunpack.c.h.b16 %v410
          %v459 = vpack.c.b16 %v429, %v427
          %v460 = vpack.c.b16 %v430, %v428
          %v461 = vpack.c.b16 %v433, %v431
          %v462 = vpack.c.b16 %v434, %v432
          %v463 = vpack.c.b16 %v437, %v435
          %v464 = vpack.c.b16 %v438, %v436
          %v465 = vpack.c.b16 %v441, %v439
          %v466 = vpack.c.b16 %v442, %v440
          %v467 = vpack.c.b16 %v445, %v443
          %v468 = vpack.c.b16 %v446, %v444
          %v469 = vpack.c.b16 %v449, %v447
          %v470 = vpack.c.b16 %v450, %v448
          %v471 = vpack.c.b16 %v453, %v451
          %v472 = vpack.c.b16 %v454, %v452
          %v473 = vpack.c.b16 %v457, %v455
          %v474 = vpack.c.b16 %v458, %v456
          %491 = vmatpush.bf16.msra.mxu0 %v473
          %492 = vmatpush.bf16.msra.mxu0 %v471
          %493 = vmatpush.bf16.msra.mxu0 %v469
          %494 = vmatpush.bf16.msra.mxu0 %v467
          %495 = vmatpush.bf16.msra.mxu0 %v465
          %496 = vmatpush.bf16.msra.mxu0 %v463
          %497 = vmatpush.bf16.msra.mxu0 %v461
          %498 = vmatpush.bf16.msra.mxu0 %v459
          %499 = vmatmul.bf16.gmra.mxu0 %v394
          %v500 = vpop.f32.mrf.mxu0
          %v501 = vadd.f32 0.0, %v500
          %v502 = vpop.f32.mrf.mxu0
          %503 = vdwg.mxu0
          %504 = vmatpush.bf16.msra.mxu0 %v474
          %505 = vmatpush.bf16.msra.mxu0 %v472
          %506 = vmatpush.bf16.msra.mxu0 %v470
          %507 = vmatpush.bf16.msra.mxu0 %v468
          %508 = vmatpush.bf16.msra.mxu0 %v466
          %509 = vmatpush.bf16.msra.mxu0 %v464
          %510 = vmatpush.bf16.msra.mxu0 %v462
          %511 = vmatpush.bf16.msra.mxu0 %v460
          %512 = vmatmul.bf16.gmra.mxu0 %v394
          %v513 = vpop.f32.mrf.mxu0
          %v514 = vadd.f32 0.0, %v513
          %v515 = vpop.f32.mrf.mxu0
          %516 = vdwg.mxu0
          %v519 = vrot.slane %v514, 7
          %vm520 = vcmask 1040384
          %v521 = vsel %vm520, %v501, %v519
          %v523 = vadd.f32 %v393, %v521
          %v524 = vlaneseq
          %vm525 = vcmp.ge.s32.totalorder %v524, 0
          %vm526 = vcmp.lt.s32.totalorder %v524, 256
          %vm527 = vmand %vm525, %vm526
          %528 = vst.msk [vmem:[#allocation5] sm:$0x3] %vm527, %v523
        $region76: #{tpu_custom_call.1} parent=47 // pred_fallthru
          _
        // Predicated region
        $region77: #{tpu_custom_call.1} parent=47 // pred_check
          %p529 = pneg %p363
        $region78: #{tpu_custom_call.1} parent=47 // pred_check_branch
          %531 = sbr.rel (%p529) target = $region80
        $region79: #{tpu_custom_call.1} parent=47 // pred_region
          %v532 = vld [vmem:[#allocation7] sm:$0xff]
          %v533 = vld [vmem:[#allocation4] sm:$0x1]
          %v535 = vperm.slane %v533, 0
          %v537 = vmul.f32 %v532, %v535
          %v538 = vpack.c.bf16 %v537, %v537
          %v539 = vld [vmem:[#allocation13] sm:$0xff]
          %v540 = vld [vmem:[#allocation13 + $0x8] sm:$0xff]
          %v541 = vld [vmem:[#allocation13 + $0x10] sm:$0xff]
          %v542 = vld [vmem:[#allocation13 + $0x18] sm:$0xff]
          %v543 = vld [vmem:[#allocation13 + $0x20] sm:$0xff]
          %v544 = vld [vmem:[#allocation13 + $0x28] sm:$0xff]
          %v545 = vld [vmem:[#allocation13 + $0x30] sm:$0xff]
          %v546 = vld [vmem:[#allocation13 + $0x38] sm:$0xff]
          %v547 = vld [vmem:[#allocation13 + $0x40] sm:$0xff]
          %v548 = vld [vmem:[#allocation13 + $0x48] sm:$0xff]
          %v549 = vld [vmem:[#allocation13 + $0x50] sm:$0xff]
          %v550 = vld [vmem:[#allocation13 + $0x58] sm:$0xff]
          %v551 = vld [vmem:[#allocation13 + $0x60] sm:$0xff]
          %v552 = vld [vmem:[#allocation13 + $0x68] sm:$0xff]
          %v553 = vld [vmem:[#allocation13 + $0x70] sm:$0xff]
          %v554 = vld [vmem:[#allocation13 + $0x78] sm:$0xff]
          %v555 = vld [vmem:[#allocation5] sm:$0x3]
          %v557 = vperm.slane %v555, 0
          %v558 = vperm.slane %v555, 1
          %v577 = vunpack.c.l.b16 %v539
          %v578 = vunpack.c.h.b16 %v539
          %v579 = vunpack.c.l.b16 %v540
          %v580 = vunpack.c.h.b16 %v540
          %v581 = vunpack.c.l.b16 %v541
          %v582 = vunpack.c.h.b16 %v541
          %v583 = vunpack.c.l.b16 %v542
          %v584 = vunpack.c.h.b16 %v542
          %v585 = vunpack.c.l.b16 %v543
          %v586 = vunpack.c.h.b16 %v543
          %v587 = vunpack.c.l.b16 %v544
          %v588 = vunpack.c.h.b16 %v544
          %v589 = vunpack.c.l.b16 %v545
          %v590 = vunpack.c.h.b16 %v545
          %v591 = vunpack.c.l.b16 %v546
          %v592 = vunpack.c.h.b16 %v546
          %v593 = vunpack.c.l.b16 %v547
          %v594 = vunpack.c.h.b16 %v547
          %v595 = vunpack.c.l.b16 %v548
          %v596 = vunpack.c.h.b16 %v548
          %v597 = vunpack.c.l.b16 %v549
          %v598 = vunpack.c.h.b16 %v549
          %v599 = vunpack.c.l.b16 %v550
          %v600 = vunpack.c.h.b16 %v550
          %v601 = vunpack.c.l.b16 %v551
          %v602 = vunpack.c.h.b16 %v551
          %v603 = vunpack.c.l.b16 %v552
          %v604 = vunpack.c.h.b16 %v552
          %v605 = vunpack.c.l.b16 %v553
          %v606 = vunpack.c.h.b16 %v553
          %v607 = vunpack.c.l.b16 %v554
          %v608 = vunpack.c.h.b16 %v554
          %v609 = vpack.c.b16 %v579, %v577
          %v610 = vpack.c.b16 %v580, %v578
          %v611 = vpack.c.b16 %v583, %v581
          %v612 = vpack.c.b16 %v584, %v582
          %v613 = vpack.c.b16 %v587, %v585
          %v614 = vpack.c.b16 %v588, %v586
          %v615 = vpack.c.b16 %v591, %v589
          %v616 = vpack.c.b16 %v592, %v590
          %v617 = vpack.c.b16 %v595, %v593
          %v618 = vpack.c.b16 %v596, %v594
          %v619 = vpack.c.b16 %v599, %v597
          %v620 = vpack.c.b16 %v600, %v598
          %v621 = vpack.c.b16 %v603, %v601
          %v622 = vpack.c.b16 %v604, %v602
          %v623 = vpack.c.b16 %v607, %v605
          %v624 = vpack.c.b16 %v608, %v606
          %641 = vmatpush.bf16.msra.mxu0 %v623
          %642 = vmatpush.bf16.msra.mxu0 %v621
          %643 = vmatpush.bf16.msra.mxu0 %v619
          %644 = vmatpush.bf16.msra.mxu0 %v617
          %645 = vmatpush.bf16.msra.mxu0 %v615
          %646 = vmatpush.bf16.msra.mxu0 %v613
          %647 = vmatpush.bf16.msra.mxu0 %v611
          %648 = vmatpush.bf16.msra.mxu0 %v609
          %649 = vmatmul.bf16.gmra.mxu0 %v538
          %v650 = vpop.f32.mrf.mxu0
          %v651 = vadd.f32 %v557, %v650
          %v652 = vpop.f32.mrf.mxu0
          %653 = vdwg.mxu0
          %654 = vmatpush.bf16.msra.mxu0 %v624
          %655 = vmatpush.bf16.msra.mxu0 %v622
          %656 = vmatpush.bf16.msra.mxu0 %v620
          %657 = vmatpush.bf16.msra.mxu0 %v618
          %658 = vmatpush.bf16.msra.mxu0 %v616
          %659 = vmatpush.bf16.msra.mxu0 %v614
          %660 = vmatpush.bf16.msra.mxu0 %v612
          %661 = vmatpush.bf16.msra.mxu0 %v610
          %662 = vmatmul.bf16.gmra.mxu0 %v538
          %v663 = vpop.f32.mrf.mxu0
          %v664 = vadd.f32 %v558, %v663
          %v665 = vpop.f32.mrf.mxu0
          %666 = vdwg.mxu0
          %v667 = vmax.f32 %v651, 0.0
          %v668 = vmax.f32 %v664, 0.0
          %v669 = vld [vmem:[%s5] sm:$0x3]
          %s670 = sld [smem:[#allocation6]]
          %v671 = vstv %s670
          %v673 = vperm.slane %v669, 0
          %v674 = vperm.slane %v669, 1
          %677 = vmatpush.xpose.msra.mxu0 0.0
          %678 = vmatpush.xpose.msra.mxu0 0.0
          %679 = vmatpush.xpose.msra.mxu0 0.0
          %680 = vmatpush.xpose.msra.mxu0 0.0
          %681 = vmatpush.xpose.msra.mxu0 0.0
          %682 = vmatpush.xpose.msra.mxu0 0.0
          %683 = vmatpush.xpose.msra.mxu0 0.0
          %684 = vmatpush.xpose.msra.mxu0 0.0
          %685 = vmatpush.xpose.msra.mxu0 0.0
          %686 = vmatpush.xpose.msra.mxu0 0.0
          %687 = vmatpush.xpose.msra.mxu0 0.0
          %688 = vmatpush.xpose.msra.mxu0 0.0
          %689 = vmatpush.xpose.msra.mxu0 0.0
          %690 = vmatpush.xpose.msra.mxu0 0.0
          %691 = vmatpush.xpose.msra.mxu0 0.0
          %692 = vmatpush.xpose.msra.mxu0 %v667
          %693 = vmatmul.f32.gmra.mxu0 %v673
          %v694 = vpop.f32.mrf.mxu0
          %v695 = vadd.f32 %v671, %v694
          %696 = vdwg.mxu0
          %697 = vmatpush.xpose.msra.mxu0 0.0
          %698 = vmatpush.xpose.msra.mxu0 0.0
          %699 = vmatpush.xpose.msra.mxu0 0.0
          %700 = vmatpush.xpose.msra.mxu0 0.0
          %701 = vmatpush.xpose.msra.mxu0 0.0
          %702 = vmatpush.xpose.msra.mxu0 0.0
          %703 = vmatpush.xpose.msra.mxu0 0.0
          %704 = vmatpush.xpose.msra.mxu0 0.0
          %705 = vmatpush.xpose.msra.mxu0 0.0
          %706 = vmatpush.xpose.msra.mxu0 0.0
          %707 = vmatpush.xpose.msra.mxu0 0.0
          %708 = vmatpush.xpose.msra.mxu0 0.0
          %709 = vmatpush.xpose.msra.mxu0 0.0
          %710 = vmatpush.xpose.msra.mxu0 0.0
          %711 = vmatpush.xpose.msra.mxu0 0.0
          %712 = vmatpush.xpose.msra.mxu0 %v668
          %713 = vmatmul.f32.gmra.mxu0 %v674
          %v714 = vpop.f32.mrf.mxu0
          %v715 = vadd.f32 %v695, %v714
          %716 = vdwg.mxu0
          %vm717 = vcmask 57344
          %718 = vst.msk [vmem:[#allocation15] sm:$0x1] %vm717, %v715
        $region80: #{tpu_custom_call.1} parent=47 // pred_fallthru
          _
        // Predicated region
        $region81: #{tpu_custom_call.1} parent=47 // pred_check
          %p719 = pneg %p205
        $region82: #{tpu_custom_call.1} parent=47 // pred_check_branch
          %721 = sbr.rel (%p719) target = $region84
        $region83: #{tpu_custom_call.1} parent=47 // pred_region
          %723 = vsyncadd [#allocation9], 0
          %s724 = scalar_lea.hbm %s7, %s28
          %s726 = sshll.u32 [#allocation15], 4
          %s727 = int_to_ptr.vmem [resolvable:$true] %s726
          %s728 = sshll.u32 %s724, 4
          %s729 = int_to_ptr.hbm [resolvable:$true] %s728
          %731 = dma.vmem_to_hbm [thread:$0]  %s727, 16, %s729, [#allocation9]
        $region84: #{tpu_custom_call.1} parent=47 // pred_fallthru
          _
        // Predicated region
        $region85: #{tpu_custom_call.1} parent=47 // pred_check
          %p732 = pneg %p205
        $region86: #{tpu_custom_call.1} parent=47 // pred_check_branch
          %734 = sbr.rel (%p732) target = $region88
        $region87: #{tpu_custom_call.1} parent=47 // pred_region
          %736 = dma.done [#allocation9], 16
        $region88: #{tpu_custom_call.1} parent=47 // pred_fallthru
          _
      $region48: #{tpu_custom_call.1} parent=5 // pred_fallthru
        _
      %p737 = scmp.le.s32.totalorder 2, %s18
      // Predicated region
      $region89: #{tpu_custom_call.1} parent=5 // pred_check
        %p738 = pneg %p737
      $region90: #{tpu_custom_call.1} parent=5 // pred_check_branch
        %740 = sbr.rel (%p738) target = $region92
      $region91: #{tpu_custom_call.1} parent=5 // pred_region
        %s741 = ssub.s32 %s18, 2
      $region92: #{tpu_custom_call.1} parent=5 // pred_fallthru
        _
    $region6: #{tpu_custom_call.1} parent=1 // loop_footer
      %s22 = sadd.s32 1, %s18
    $region7: #{tpu_custom_call.1} parent=1 // loop_footer_branch
      %17 = sbr.rel target = $region3
    $region8: #{tpu_custom_call.1} parent=1 // loop_exit
      _
    %742 = vsyncpa [#allocation8], 1
    %s743 = scalar_lea.sflag [#allocation8], 1
    %744 = vsyncpa %s743, 1
    %745 = vsyncpa [#allocation11], 1
    %746 = vsyncpa [#allocation14], 1
    %747 = vsyncpa [#allocation9], 1
    %s748 = scalar_lea.sflag [#allocation9], 1
    %749 = vsyncpa %s748, 1

</llo_original>
